<compile_context>
chip_gen: v7x
topology: tpu7x:2x2x1
jax: 0.10.0
libtpu: 0.0.40
codegen_flags: <defaults>
</compile_context>

<pallas_src>
import functools

import jax
import jax.numpy as jnp
from jax.experimental import pallas as pl
from jax.experimental.pallas import tpu as pltpu


# ----------------------- parameter construction (glue) -----------------------

def henaff_init(n, key):
    """Deterministic Henaff init: skew-symmetric with alternating superdiag."""
    s = jax.random.uniform(key, (n // 2,), minval=-jnp.pi, maxval=jnp.pi,
                           dtype=jnp.float32)
    diag = jnp.zeros((n - 1,), jnp.float32).at[::2].set(s)
    A = jnp.diag(diag, k=1)
    return A - A.T


def build_orthogonal_kernel(max_size, key):
    """Replicates Orthogonal.__init__ / _A / _B."""
    log_orthogonal_kernel = henaff_init(max_size, key)   # nn.Parameter init
    A = jnp.triu(log_orthogonal_kernel, k=1)
    A = A - A.T                                           # _A (skew-symmetric)
    B = jax.scipy.linalg.expm(A)                          # _B (orthogonal)
    return B


# ------------------------------ Pallas kernel --------------------------------

def _matmul_kernel(x_ref, w_ref, o_ref, *, compute_dtype):
    x = x_ref[...]
    w = w_ref[...]
    if compute_dtype is not None:
        # In-kernel cast: rides a VPU slot, adds zero HBM traffic (a wrapper
        # astype would be an un-fused extra read+write pass over x).
        x = x.astype(compute_dtype)
        w = w.astype(compute_dtype)
    # One MXU matmul per M-tile; f32 accumulation regardless of operand dtype.
    o_ref[...] = jnp.dot(x, w,
                         preferred_element_type=jnp.float32).astype(o_ref.dtype)


def _round_up(a, b):
    return ((a + b - 1) // b) * b


def orthogonal_forward(x, W, *, tm=2048, compute_dtype=None,
                       vmem_budget_bytes=24 << 20):
    """out = x @ W, with the matmul executed in a Pallas TPU kernel.

    x: [batch..., input_size], W: [input_size, output_size]

    tm:            max rows per grid step (capped by the VMEM budget).
    compute_dtype: optional matmul-operand dtype (e.g. jnp.bfloat16 on
                   v6e / v7x); cast happens in-kernel, accumulation stays f32,
                   output keeps x.dtype.
    """
    batch_shape = x.shape[:-1]
    K = x.shape[-1]
    N = W.shape[-1]
    out_dtype = x.dtype

    x2 = x.reshape(-1, K)
    M = x2.shape[0]

    x_item = jnp.dtype(x.dtype).itemsize
    w_item = jnp.dtype(W.dtype).itemsize
    out_item = jnp.dtype(out_dtype).itemsize

    # Sublane granularity for the M-tile: 8 for 32-bit, 16 for bf16, 32 for 8-bit.
    items = [x_item, w_item]
    if compute_dtype is not None:
        items.append(jnp.dtype(compute_dtype).itemsize)
    sub = {4: 8, 2: 16, 1: 32}.get(min(items), 8)

    # VMEM accounting: W slab stays resident (constant index_map) but is still
    # double-buffered by default; x/out tiles are double-buffered.
    # TODO(synk): for very large max_size (esp. v7x's 64 MiB VMEM) add K/N grid
    # axes with an f32 accumulator + pl.when init/finalize, and/or
    # pipeline_mode=pl.Buffered(1) on the W BlockSpec; not needed at these sizes.
    w_bytes = 2 * K * N * w_item
    row_bytes = 2 * (K * x_item + N * out_item)
    rows_budget = max((vmem_budget_bytes - w_bytes) // row_bytes, 256)
    tm = max(sub, min(tm, (rows_budget // sub) * sub))

    if M <= max(tm // 2, 512):
        # Small batch: a single full-extent M block — no padding, no masking.
        tm_eff = M
    else:
        # Large batch: guarantee >=2 grid steps so a v7x megacore can shard M
        # across both TensorCores; last block may be partial (Pallas masks the
        # partial output store; the garbage tail rows of the x block only feed
        # those masked rows).
        tm_eff = min(tm, _round_up(pl.cdiv(M, 2), sub))
    grid_m = pl.cdiv(M, tm_eff)

    # True-shape cost estimate (no padded dims).
    cost = pl.CostEstimate(
        flops=2 * M * K * N,
        transcendentals=0,
        bytes_accessed=M * K * x_item + K * N * w_item + M * N * out_item)

    # Only raise the scoped-VMEM limit when actually required.
    compiler_kwargs = {}
    vmem_needed = w_bytes + row_bytes * tm_eff
    if vmem_needed > (32 << 20):
        compiler_kwargs["vmem_limit_bytes"] = int(vmem_needed * 1.25)

    kernel = functools.partial(_matmul_kernel, compute_dtype=compute_dtype)

    out = pl.pallas_call(
        kernel,
        out_shape=jax.ShapeDtypeStruct((M, N), out_dtype),
        grid_spec=pltpu.PrefetchScalarGridSpec(
            num_scalar_prefetch=0,
            grid=(grid_m,),
            in_specs=[
                # x tile along M; K is the full array dim (no lane padding —
                # the MXU pads internally, and this avoids a 4x-larger x copy).
                pl.BlockSpec((tm_eff, K), lambda i: (i, 0)),
                # Full weight slab; constant block index -> stays resident in
                # VMEM across grid steps (no per-step re-DMA).
                pl.BlockSpec((K, N), lambda i: (0, 0)),
            ],
            # Full-width N output block; true out_shape, no post-slice.
            out_specs=pl.BlockSpec((tm_eff, N), lambda i: (i, 0)),
        ),
        compiler_params=pltpu.CompilerParams(
            dimension_semantics=("parallel",),   # shards M across TCs on v7x
            **compiler_kwargs),
        cost_estimate=cost,
    )(x2, W)

    # Restore leading batch dims (out is already exactly (M, N)).
    return out.reshape(*batch_shape, N)


# ---------------------------------- main --------------------------------------

if __name__ == "__main__":
    input_size = 32
    output_size = 64
    max_size = max(input_size, output_size)

    key = jax.random.PRNGKey(0)
    key_param, key_x = jax.random.split(key)

    # Deterministic parameter (log_orthogonal_kernel -> orthogonal_kernel).
    # TODO(synk): orthogonal_step (expm_frechet Riemannian update) is training-
    # time glue and is not part of the forward; not implemented here.
    B = build_orthogonal_kernel(max_size, key_param)          # (64, 64)
    W = B[:input_size, :output_size]                          # (32, 64)

    # Example input: arbitrary leading batch dims, features last.
    x = jax.random.normal(key_x, (2, 8, input_size), dtype=jnp.float32)

    # f32 path (default): single full-extent block, no padding/masking.
    out = orthogonal_forward(x, W)
    out = jax.block_until_ready(out)
    ref = x @ W
    assert out.shape == (2, 8, output_size)
    assert jnp.allclose(out, ref, atol=1e-5, rtol=1e-5)

    # Non-multiple-of-8 flattened batch (full-extent M block, M=15).
    x_odd = jax.random.normal(key_x, (3, 5, input_size), dtype=jnp.float32)
    out_odd = jax.block_until_ready(orthogonal_forward(x_odd, W))
    assert jnp.allclose(out_odd, x_odd @ W, atol=1e-5, rtol=1e-5)

    # Multi-step grid with a partial trailing block (masked output store).
    x_big = jax.random.normal(key_x, (1030, input_size), dtype=jnp.float32)
    out_big = jax.block_until_ready(orthogonal_forward(x_big, W))
    assert jnp.allclose(out_big, x_big @ W, atol=1e-5, rtol=1e-5)

    # Optional bf16 compute path (in-kernel cast; f32 accumulation) — looser
    # tolerance against the f32 reference, as documented.
    out_bf16 = jax.block_until_ready(
        orthogonal_forward(x, W, compute_dtype=jnp.bfloat16))
    assert jnp.allclose(out_bf16, ref, atol=2e-2, rtol=2e-2)

    print("KERNEL_OK")
</pallas_src>

<mosaic_0001>
module attributes {stable_mosaic.version = 11 : i64} {
  func.func @_matmul_kernel(%arg0: i32, %arg1: memref<16x32xf32, #tpu.memory_space<vmem>>, %arg2: memref<32x64xf32, #tpu.memory_space<vmem>>, %arg3: memref<16x64xf32, #tpu.memory_space<vmem>>) attributes {dimension_semantics = [#tpu.dimension_semantics<parallel>], iteration_bounds = array<i64: 1>, scalar_prefetch = 0 : i64, scratch_operands = 0 : i64, tpu.core_type = #tpu.core_type<tc>, window_params = [{transform_indices = @transform_0, window_bounds = array<i64: 16, 32>}, {pipeline_mode = #tpu.pipeline_mode<synchronous>, transform_indices = @transform_1, window_bounds = array<i64: 32, 64>}, {transform_indices = @transform_2, window_bounds = array<i64: 16, 64>}]} {
    %c0 = arith.constant 0 : index
    %c0_0 = arith.constant 0 : index
    %0 = vector.load %arg1[%c0, %c0_0] : memref<16x32xf32, #tpu.memory_space<vmem>>, vector<16x32xf32>
    %c0_1 = arith.constant 0 : index
    %c0_2 = arith.constant 0 : index
    %1 = vector.load %arg2[%c0_1, %c0_2] : memref<32x64xf32, #tpu.memory_space<vmem>>, vector<32x64xf32>
    %cst = arith.constant dense<0.000000e+00> : vector<16x64xf32>
    %2 = tpu.matmul %0, %1, %cst {dimension_numbers = #tpu.dot_dimension_numbers<[1], [0], [0], [1], [0, 0, 1, 1], [], []>} : vector<16x32xf32>, vector<32x64xf32>, vector<16x64xf32> -> vector<16x64xf32>
    %c0_3 = arith.constant 0 : index
    %c0_4 = arith.constant 0 : index
    %3 = vector.load %arg3[%c0_3, %c0_4] : memref<16x64xf32, #tpu.memory_space<vmem>>, vector<16x64xf32>
    tpu.vector_store %arg3[%c0_3, %c0_4], %2 {strides = array<i32>} : memref<16x64xf32, #tpu.memory_space<vmem>>, vector<16x64xf32>,
    return
  }
  func.func @transform_0(%arg0: i32) -> (i32, i32) {
    %c0_i32 = arith.constant 0 : i32
    %c0_i32_0 = arith.constant 0 : i32
    return %arg0, %c0_i32 : i32, i32
  }
  func.func @transform_1(%arg0: i32) -> (i32, i32) {
    %c0_i32 = arith.constant 0 : i32
    %c0_i32_0 = arith.constant 0 : i32
    %c0_i32_1 = arith.constant 0 : i32
    return %c0_i32, %c0_i32_0 : i32, i32
  }
  func.func @transform_2(%arg0: i32) -> (i32, i32) {
    %c0_i32 = arith.constant 0 : i32
    %c0_i32_0 = arith.constant 0 : i32
    return %arg0, %c0_i32 : i32, i32
  }
}

</mosaic_0001>

<llo_original>
// kernel: tpu_custom_call.1
$region0: #{tpu_custom_call.1}
  #allocation0 [shape = 'u32[]', space=smem, size = 0x4, offset = 0x4, fixed_abs, tag = 'smem constant byte address 0x4 - core index']
  #allocation1 [shape = 'u32[144,128]{1,0:T(1,128)}', space=vmem, size = 0x12000, scoped, tag = 'internal scratch']
  %s0 = inlined_call_operand.hbm [shape: f32[16,32], index: 0, kind: input, shape index: {}]
  %s1 = inlined_call_operand.hbm [shape: f32[32,64], index: 1, kind: input, shape index: {}]
  %s2 = inlined_call_operand.hbm [shape: f32[16,64], index: 2, kind: output, shape index: {}]
  %s3 = sld [smem:[#allocation0]]
  $region26: #{tpu_custom_call.1} parent=0
    _
  %s5 = ssub.s32 1, %s3
  %s6 = scalar_select 0, %s5, %s3
  $region1: #{tpu_custom_call.1} parent=0
    #allocation2 [shape = 'u8[8192]{0}', space=vmem, size = 0x2000, scoped, tag = 'input window, operand 0, single buffered']
    #allocation3 [shape = 's32[1]{0}', space=sflag, size = 0x4, scoped, tag = 'scoped memory for tpu_custom_call.1']
    #allocation4 [shape = 's32[1]{0}', space=sflag, size = 0x4, scoped, tag = 'scoped memory for tpu_custom_call.1']
    #allocation5 [shape = 'u8[16384]{0}', space=vmem, size = 0x4000, scoped, tag = 'input window, operand 1, single buffered']
    #allocation6 [shape = 's32[1]{0}', space=sflag, size = 0x4, scoped, tag = 'scoped memory for tpu_custom_call.1']
    #allocation7 [shape = 'u8[8192]{0}', space=vmem, size = 0x2000, scoped, tag = 'output window, operand 0, single buffered']
    %7 = vsyncpa [#allocation3], 0
    %8 = vsyncpa [#allocation6], 0
    %9 = vsyncpa [#allocation4], 0
    // Predicated region
    $region2: #{tpu_custom_call.1} parent=1 // pred_check
      _
    $region3: #{tpu_custom_call.1} parent=1 // pred_check_branch
      %11 = sbr.rel (0) target = $region5
    $region4: #{tpu_custom_call.1} parent=1 // pred_region
      %s13 = ssub.s32 256, 256
      %14 = vsyncadd [#allocation3], %s13
      %s15 = sshll.u32 [#allocation2], 4
      %s16 = int_to_ptr.vmem [resolvable:$true] %s15
      %21 = dma.hbm_to_vmem [thread:$0]  %s0, 256, %s16, [#allocation3], 128, 128, 8
    $region5: #{tpu_custom_call.1} parent=1 // pred_fallthru
      _
    // Predicated region
    $region6: #{tpu_custom_call.1} parent=1 // pred_check
      _
    $region7: #{tpu_custom_call.1} parent=1 // pred_check_branch
      %23 = sbr.rel (0) target = $region9
    $region8: #{tpu_custom_call.1} parent=1 // pred_region
      %s25 = ssub.s32 512, 512
      %26 = vsyncadd [#allocation6], %s25
      %s27 = sshll.u32 [#allocation5], 4
      %s28 = int_to_ptr.vmem [resolvable:$true] %s27
      %33 = dma.hbm_to_vmem [thread:$0]  %s1, 512, %s28, [#allocation6], 128, 128, 8
    $region9: #{tpu_custom_call.1} parent=1 // pred_fallthru
      _
    // Predicated region
    $region10: #{tpu_custom_call.1} parent=1 // pred_check
      _
    $region11: #{tpu_custom_call.1} parent=1 // pred_check_branch
      %35 = sbr.rel (0) target = $region13
    $region12: #{tpu_custom_call.1} parent=1 // pred_region
      %36 = dma.done [#allocation3], 256
    $region13: #{tpu_custom_call.1} parent=1 // pred_fallthru
      _
    // Predicated region
    $region14: #{tpu_custom_call.1} parent=1 // pred_check
      _
    $region15: #{tpu_custom_call.1} parent=1 // pred_check_branch
      %38 = sbr.rel (0) target = $region17
    $region16: #{tpu_custom_call.1} parent=1 // pred_region
      %39 = dma.done [#allocation6], 512
    $region17: #{tpu_custom_call.1} parent=1 // pred_fallthru
      _
    %v40 = vld [vmem:[#allocation2] sm:$0xff]
    %v41 = vld [vmem:[#allocation2 + $0x8] sm:$0xff]
    %v42 = vld [vmem:[#allocation5] sm:$0xff]
    %v43 = vld [vmem:[#allocation5 + $0x8] sm:$0xff]
    %v44 = vld [vmem:[#allocation5 + $0x10] sm:$0xff]
    %v45 = vld [vmem:[#allocation5 + $0x18] sm:$0xff]
    %vm46 = vcmask 261120
    %v48 = vsel %vm46, %v40, 0
    %v51 = vsel %vm46, %v41, 0
    %53 = vmatprep.subr.mxu0 0.0
    %54 = vmatpush1.msra.mxu0 %v42
    %55 = vmatprep.subr.mxu0 0.0
    %56 = vmatpush1.msra.mxu0 %v43
    %57 = vmatprep.subr.mxu0 0.0
    %58 = vmatpush1.msra.mxu0 %v44
    %59 = vmatprep.subr.mxu0 0.0
    %60 = vmatpush1.msra.mxu0 %v45
    %61 = vmatprep.subr.mxu0 0.0
    %62 = vmatpush1.msra.mxu0 0.0
    %63 = vmatprep.subr.mxu0 0.0
    %64 = vmatpush1.msra.mxu0 0.0
    %65 = vmatprep.subr.mxu0 0.0
    %66 = vmatpush1.msra.mxu0 0.0
    %67 = vmatprep.subr.mxu0 0.0
    %68 = vmatpush1.msra.mxu0 0.0
    %69 = vmatprep.subr.mxu0 0.0
    %70 = vmatpush1.msra.mxu0 0.0
    %71 = vmatprep.subr.mxu0 0.0
    %72 = vmatpush1.msra.mxu0 0.0
    %73 = vmatprep.subr.mxu0 0.0
    %74 = vmatpush1.msra.mxu0 0.0
    %75 = vmatprep.subr.mxu0 0.0
    %76 = vmatpush1.msra.mxu0 0.0
    %77 = vmatprep.subr.mxu0 0.0
    %78 = vmatpush1.msra.mxu0 0.0
    %79 = vmatprep.subr.mxu0 0.0
    %80 = vmatpush1.msra.mxu0 0.0
    %81 = vmatprep.subr.mxu0 0.0
    %82 = vmatpush1.msra.mxu0 0.0
    %83 = vmatprep.subr.mxu0 0.0
    %84 = vmatpush1.msra.mxu0 0.0
    %85 = vmatprep.subr.mxu0 0.0
    %86 = vmatpush1.msra.mxu0 0.0
    %87 = vmatprep.subr.mxu0 0.0
    %88 = vmatpush1.msra.mxu0 0.0
    %89 = vmatprep.subr.mxu0 0.0
    %90 = vmatpush1.msra.mxu0 0.0
    %91 = vmatprep.subr.mxu0 0.0
    %92 = vmatpush1.msra.mxu0 0.0
    %93 = vmatprep.subr.mxu0 0.0
    %94 = vmatpush1.msra.mxu0 0.0
    %95 = vmatprep.subr.mxu0 0.0
    %96 = vmatpush1.msra.mxu0 0.0
    %97 = vmatprep.subr.mxu0 0.0
    %98 = vmatpush1.msra.mxu0 0.0
    %99 = vmatprep.subr.mxu0 0.0
    %100 = vmatpush1.msra.mxu0 0.0
    %101 = vmatprep.subr.mxu0 0.0
    %102 = vmatpush1.msra.mxu0 0.0
    %103 = vmatprep.subr.mxu0 0.0
    %104 = vmatpush1.msra.mxu0 0.0
    %105 = vmatprep.subr.mxu0 0.0
    %106 = vmatpush1.msra.mxu0 0.0
    %107 = vmatprep.subr.mxu0 0.0
    %108 = vmatpush1.msra.mxu0 0.0
    %109 = vmatprep.subr.mxu0 0.0
    %110 = vmatpush1.msra.mxu0 0.0
    %111 = vmatprep.subr.mxu0 0.0
    %112 = vmatpush1.msra.mxu0 0.0
    %113 = vmatprep.subr.mxu0 0.0
    %114 = vmatpush1.msra.mxu0 0.0
    %115 = vmatprep.subr.mxu0 0.0
    %116 = vmatpush1.msra.mxu0 0.0
    %117 = vmatprep.mubr.f32.mxu0 0.0
    %118 = vmatmul.mubr.f32.gmra.mrb[0].mxu0 %v48
    %v119 = vpop.f32.mrb[0].mxu0
    %v120 = vadd.f32 0.0, %v119
    %v121 = vpop.f32.mrb[0].mxu0
    %122 = vmatprep.mubr.f32.mxu0 0.0
    %123 = vmatmul.mubr.f32.gmra.mrb[0].mxu0 %v51
    %v124 = vpop.f32.mrb[0].mxu0
    %v125 = vadd.f32 0.0, %v124
    %v126 = vpop.f32.mrb[0].mxu0
    %127 = vdwg.mxu0
    %vm128 = vcmask 523264
    %129 = vst.msk [vmem:[#allocation7] sm:$0xff] %vm128, %v120
    %130 = vst.msk [vmem:[#allocation7 + $0x8] sm:$0xff] %vm128, %v125
    // Predicated region
    $region18: #{tpu_custom_call.1} parent=1 // pred_check
      _
    $region19: #{tpu_custom_call.1} parent=1 // pred_check_branch
      %132 = sbr.rel (0) target = $region21
    $region20: #{tpu_custom_call.1} parent=1 // pred_region
      %s134 = ssub.s32 256, 256
      %135 = vsyncadd [#allocation4], %s134
      %s136 = sshll.u32 [#allocation7], 4
      %s137 = int_to_ptr.vmem [resolvable:$true] %s136
      %142 = dma.vmem_to_hbm [thread:$0]  %s137, 256, %s2, [#allocation4], 128, 128, 8
    $region21: #{tpu_custom_call.1} parent=1 // pred_fallthru
      _
    // Predicated region
    $region22: #{tpu_custom_call.1} parent=1 // pred_check
      _
    $region23: #{tpu_custom_call.1} parent=1 // pred_check_branch
      %144 = sbr.rel (0) target = $region25
    $region24: #{tpu_custom_call.1} parent=1 // pred_region
      %145 = dma.done [#allocation4], 256
    $region25: #{tpu_custom_call.1} parent=1 // pred_fallthru
      _
    %146 = vsyncpa [#allocation3], 1
    %147 = vsyncpa [#allocation6], 1
    %148 = vsyncpa [#allocation4], 1

</llo_original>
